<compile_context>
chip_gen: v7x
topology: tpu7x:2x2x1
jax: 0.10.0
libtpu: 0.0.40
codegen_flags: <defaults>
</compile_context>

<pallas_src>
import jax
import jax.numpy as jnp
from jax.experimental import pallas as pl
from jax.experimental.pallas import tpu as pltpu

EPS = 1e-5


# ------------------------------- kernels ------------------------------------

def _bn_affine_store(y, gamma_ref, beta_ref, o_ref):
    # y: (B, tc, L) f32;  gamma/beta refs: (B, tc, 1) f32
    mean = jnp.mean(y, axis=(0, 2), keepdims=True)             # (1, tc, 1)
    d = y - mean                                               # reused below
    var = jnp.mean(d * d, axis=(0, 2), keepdims=True)          # biased variance
    y_hat = d * jax.lax.rsqrt(var + EPS)
    o_ref[...] = (gamma_ref[...] * y_hat + beta_ref[...]).astype(o_ref.dtype)


def cbn1d_noise_kernel(nw_ref, x_ref, noise_ref, gamma_ref, beta_ref, o_ref):
    # nw_ref: (1, 1) SMEM scalar; x/noise: (B, tc, L); gamma/beta: (B, tc, 1)
    y = (x_ref[...].astype(jnp.float32)
         + nw_ref[0, 0] * noise_ref[...].astype(jnp.float32))
    _bn_affine_store(y, gamma_ref, beta_ref, o_ref)


def cbn1d_kernel(x_ref, gamma_ref, beta_ref, o_ref):
    # Noise-free specialization (NoiseInjection weight statically zero).
    _bn_affine_store(x_ref[...].astype(jnp.float32), gamma_ref, beta_ref, o_ref)


# ------------------------------- wrapper -------------------------------------

def _choose_c_tile(B, C, L, itemsize, n_act_arrays, budget_bytes=24 << 20):
    """Largest C-tile whose double-buffered activation traffic fits the budget."""
    # per-channel bytes: activation arrays double-buffered + f32 temporaries
    per_c = n_act_arrays * 2 * B * L * itemsize + 3 * B * L * 4
    max_tc = max(1, budget_bytes // max(1, per_c))
    # valid tiles: divide C and satisfy the (8, 128) sublane constraint
    candidates = [t for t in range(1, C + 1)
                  if C % t == 0 and (t == C or t % 8 == 0)]
    fitting = [t for t in candidates if t <= max_tc]
    return max(fitting) if fitting else min(candidates)


def conditional_batch_norm_1d(x, style, w_sn, bias, noise=None,
                              noise_weight=None, key=None):
    """Forward of ConditionalBatchNorm1d (training-mode batch statistics)."""
    B, C, L = x.shape

    # --- NoiseInjection dispatch: trace-time specialization ---
    use_noise = noise_weight is not None
    if use_noise:
        try:  # statically-known zero weight (module init / inference): skip read
            if float(jnp.asarray(noise_weight).reshape(-1)[0]) == 0.0:
                use_noise = False
        except Exception:
            pass  # traced value: keep the noise path
    if use_noise and noise is None:
        if key is None:
            raise ValueError("noise_weight may be nonzero: pass `noise` or `key`")
        noise = jax.random.normal(key, x.shape, dtype=x.dtype)

    # --- style -> (gamma, beta): hoisted out of the kernel (tiny matmul) ---
    gb = (style.astype(jnp.float32) @ w_sn.astype(jnp.float32).T
          + bias.astype(jnp.float32))                          # (B, 2C)
    gamma = gb[:, :C].reshape(B, C, 1)
    beta = gb[:, C:].reshape(B, C, 1)

    itemsize = jnp.dtype(x.dtype).itemsize
    tc = _choose_c_tile(B, C, L, itemsize, n_act_arrays=3 if use_noise else 2)
    grid = (C // tc,)

    # NOTE: for very small L (< 128) the output stores are lane-masked; real
    # generator shapes have L >= 128, and a wrapper-side transpose to a
    # lane-dense layout would cost an extra full HBM pass, so it is not done.
    act_spec = pl.BlockSpec((B, tc, L), lambda i: (0, i, 0))
    gb_spec = pl.BlockSpec((B, tc, 1), lambda i: (0, i, 0))
    smem_spec = pl.BlockSpec(memory_space=pltpu.MemorySpace.SMEM)
    compiler_params = pltpu.CompilerParams(
        dimension_semantics=("parallel",),       # megacore-shard the C axis
        vmem_limit_bytes=48 * 1024 * 1024,
    )
    out_shape = jax.ShapeDtypeStruct((B, C, L), x.dtype)

    if use_noise:
        return pl.pallas_call(
            cbn1d_noise_kernel,
            out_shape=out_shape,
            grid=grid,
            in_specs=[smem_spec, act_spec, act_spec, gb_spec, gb_spec],
            out_specs=act_spec,
            compiler_params=compiler_params,
        )(jnp.asarray(noise_weight, jnp.float32).reshape(1, 1),
          x, noise, gamma, beta)

    return pl.pallas_call(
        cbn1d_kernel,
        out_shape=out_shape,
        grid=grid,
        in_specs=[act_spec, gb_spec, gb_spec],
        out_specs=act_spec,
        compiler_params=compiler_params,
    )(x, gamma, beta)


# ------------------- parameter setup (plain-JAX glue) ------------------------

def spectral_normalize(w, n_iter=30, eps=1e-12):
    # Power-iteration estimate of the largest singular value.
    # TODO(synk): PyTorch spectral_norm does 1 iteration/forward with a
    # persistent u buffer; this converged estimate will not match bit-for-bit.
    u = jnp.full((w.shape[0],), 1.0 / jnp.sqrt(w.shape[0]), jnp.float32)
    v = jnp.zeros((w.shape[1],), jnp.float32)
    for _ in range(n_iter):
        v = w.T @ u
        v = v / (jnp.linalg.norm(v) + eps)
        u = w @ v
        u = u / (jnp.linalg.norm(u) + eps)
    sigma = u @ (w @ v)
    return w / sigma


def init_params(key, num_features, z_channels):
    # Linear(z_channels, 2*num_features): weight ~ N(1, 0.02), bias = 0
    w = 1.0 + 0.02 * jax.random.normal(
        key, (2 * num_features, z_channels), jnp.float32
    )
    b = jnp.zeros((2 * num_features,), jnp.float32)
    noise_weight = jnp.zeros((1,), jnp.float32)   # NoiseInjection.weight init
    return w, b, noise_weight


def reference_forward(x, style, w_sn, bias, noise, noise_weight):
    xf = x.astype(jnp.float32)
    if noise is not None and noise_weight is not None:
        w = jnp.asarray(noise_weight, jnp.float32).reshape(())
        y = xf + w * noise.astype(jnp.float32)
    else:
        y = xf
    mean = jnp.mean(y, axis=(0, 2), keepdims=True)
    var = jnp.mean((y - mean) ** 2, axis=(0, 2), keepdims=True)
    y_hat = (y - mean) / jnp.sqrt(var + EPS)
    gb = style.astype(jnp.float32) @ w_sn.T + bias
    C = x.shape[1]
    gamma, beta = gb[:, :C], gb[:, C:]
    return gamma[:, :, None] * y_hat + beta[:, :, None]


if __name__ == "__main__":
    B, C, L, Z = 2, 4, 16, 128   # num_features=4, z_channels=128 (module default)

    key = jax.random.PRNGKey(0)
    k_x, k_style, k_noise, k_w = jax.random.split(key, 4)

    x = jax.random.normal(k_x, (B, C, L), jnp.float32)
    style = jax.random.normal(k_style, (B, Z), jnp.float32)
    noise = jax.random.normal(k_noise, (B, C, L), jnp.float32)

    w_raw, bias, noise_weight0 = init_params(k_w, C, Z)   # NoiseInjection w = 0
    w_sn = spectral_normalize(w_raw)

    # Path 1: noise-free specialization (module-init weight == 0 -> noise skipped)
    out0 = conditional_batch_norm_1d(x, style, w_sn, bias,
                                     noise=noise, noise_weight=noise_weight0)
    out0 = jax.block_until_ready(out0)
    ref0 = reference_forward(x, style, w_sn, bias, noise, noise_weight0)
    assert out0.shape == (B, C, L)
    assert jnp.allclose(out0, ref0, rtol=1e-3, atol=1e-3)

    # Path 2: noisy kernel (non-zero NoiseInjection weight, explicit noise)
    noise_weight = jnp.full((1,), 0.3, jnp.float32)
    out1 = conditional_batch_norm_1d(x, style, w_sn, bias,
                                     noise=noise, noise_weight=noise_weight)
    out1 = jax.block_until_ready(out1)
    ref1 = reference_forward(x, style, w_sn, bias, noise, noise_weight)
    assert out1.shape == (B, C, L)
    assert jnp.allclose(out1, ref1, rtol=1e-3, atol=1e-3)

    print("KERNEL_OK")
</pallas_src>

<mosaic_0001>
module attributes {stable_mosaic.version = 11 : i64} {
  func.func @cbn1d_kernel(%arg0: i32, %arg1: memref<2x4x16xf32, #tpu.memory_space<vmem>>, %arg2: memref<2x4x1xf32, #tpu.memory_space<vmem>>, %arg3: memref<2x4x1xf32, #tpu.memory_space<vmem>>, %arg4: memref<2x4x16xf32, #tpu.memory_space<vmem>>) attributes {dimension_semantics = [#tpu.dimension_semantics<parallel>], iteration_bounds = array<i64: 1>, scalar_prefetch = 0 : i64, scratch_operands = 0 : i64, tpu.core_type = #tpu.core_type<tc>, window_params = [{transform_indices = @transform_0, window_bounds = array<i64: 2, 4, 16>}, {transform_indices = @transform_1, window_bounds = array<i64: 2, 4, 1>}, {transform_indices = @transform_2, window_bounds = array<i64: 2, 4, 1>}, {transform_indices = @transform_3, window_bounds = array<i64: 2, 4, 16>}]} {
    %c0 = arith.constant 0 : index
    %c0_0 = arith.constant 0 : index
    %c0_1 = arith.constant 0 : index
    %0 = vector.load %arg1[%c0, %c0_0, %c0_1] : memref<2x4x16xf32, #tpu.memory_space<vmem>>, vector<2x4x16xf32>
    %cst = arith.constant dense<0.000000e+00> : vector<4xf32>
    %1 = vector.multi_reduction <add>, %0, %cst [0, 2] : vector<2x4x16xf32> to vector<4xf32>
    %2 = vector.shape_cast %1 : vector<4xf32> to vector<1x4x1xf32>
    %cst_2 = arith.constant 3.200000e+01 : f32
    %3 = vector.broadcast %cst_2 : f32 to vector<1x4x1xf32>
    %4 = arith.divf %2, %3 : vector<1x4x1xf32>
    %5 = vector.broadcast %4 : vector<1x4x1xf32> to vector<2x4x16xf32>
    %6 = arith.subf %0, %5 : vector<2x4x16xf32>
    %7 = arith.mulf %6, %6 : vector<2x4x16xf32>
    %cst_3 = arith.constant dense<0.000000e+00> : vector<4xf32>
    %8 = vector.multi_reduction <add>, %7, %cst_3 [0, 2] : vector<2x4x16xf32> to vector<4xf32>
    %9 = vector.shape_cast %8 : vector<4xf32> to vector<1x4x1xf32>
    %cst_4 = arith.constant 3.200000e+01 : f32
    %10 = vector.broadcast %cst_4 : f32 to vector<1x4x1xf32>
    %11 = arith.divf %9, %10 : vector<1x4x1xf32>
    %cst_5 = arith.constant 9.99999974E-6 : f32
    %12 = vector.broadcast %cst_5 : f32 to vector<1x4x1xf32>
    %13 = arith.addf %11, %12 : vector<1x4x1xf32>
    %14 = math.rsqrt %13 : vector<1x4x1xf32>
    %15 = vector.broadcast %14 : vector<1x4x1xf32> to vector<2x4x16xf32>
    %16 = arith.mulf %6, %15 : vector<2x4x16xf32>
    %c0_6 = arith.constant 0 : index
    %c0_7 = arith.constant 0 : index
    %c0_8 = arith.constant 0 : index
    %17 = vector.load %arg2[%c0_6, %c0_7, %c0_8] : memref<2x4x1xf32, #tpu.memory_space<vmem>>, vector<2x4x1xf32>
    %18 = vector.broadcast %17 : vector<2x4x1xf32> to vector<2x4x16xf32>
    %19 = arith.mulf %18, %16 : vector<2x4x16xf32>
    %c0_9 = arith.constant 0 : index
    %c0_10 = arith.constant 0 : index
    %c0_11 = arith.constant 0 : index
    %20 = vector.load %arg3[%c0_9, %c0_10, %c0_11] : memref<2x4x1xf32, #tpu.memory_space<vmem>>, vector<2x4x1xf32>
    %21 = vector.broadcast %20 : vector<2x4x1xf32> to vector<2x4x16xf32>
    %22 = arith.addf %19, %21 : vector<2x4x16xf32>
    %c0_12 = arith.constant 0 : index
    %c0_13 = arith.constant 0 : index
    %c0_14 = arith.constant 0 : index
    %23 = vector.load %arg4[%c0_12, %c0_13, %c0_14] : memref<2x4x16xf32, #tpu.memory_space<vmem>>, vector<2x4x16xf32>
    tpu.vector_store %arg4[%c0_12, %c0_13, %c0_14], %22 {strides = array<i32>} : memref<2x4x16xf32, #tpu.memory_space<vmem>>, vector<2x4x16xf32>,
    return
  }
  func.func @transform_0(%arg0: i32) -> (i32, i32, i32) {
    %c0_i32 = arith.constant 0 : i32
    %c0_i32_0 = arith.constant 0 : i32
    %c0_i32_1 = arith.constant 0 : i32
    return %c0_i32, %arg0, %c0_i32_0 : i32, i32, i32
  }
  func.func @transform_1(%arg0: i32) -> (i32, i32, i32) {
    %c0_i32 = arith.constant 0 : i32
    %c0_i32_0 = arith.constant 0 : i32
    %c0_i32_1 = arith.constant 0 : i32
    return %c0_i32, %arg0, %c0_i32_0 : i32, i32, i32
  }
  func.func @transform_2(%arg0: i32) -> (i32, i32, i32) {
    %c0_i32 = arith.constant 0 : i32
    %c0_i32_0 = arith.constant 0 : i32
    %c0_i32_1 = arith.constant 0 : i32
    return %c0_i32, %arg0, %c0_i32_0 : i32, i32, i32
  }
  func.func @transform_3(%arg0: i32) -> (i32, i32, i32) {
    %c0_i32 = arith.constant 0 : i32
    %c0_i32_0 = arith.constant 0 : i32
    %c0_i32_1 = arith.constant 0 : i32
    return %c0_i32, %arg0, %c0_i32_0 : i32, i32, i32
  }
}

</mosaic_0001>

<llo_original>
// kernel: tpu_custom_call.1
$region0: #{tpu_custom_call.1}
  #allocation0 [shape = 'u32[]', space=smem, size = 0x4, offset = 0x4, fixed_abs, tag = 'smem constant byte address 0x4 - core index']
  #allocation1 [shape = 'u32[144,128]{1,0:T(1,128)}', space=vmem, size = 0x12000, scoped, tag = 'internal scratch']
  %s0 = inlined_call_operand.vmem [shape: f32[2,4,16], index: 0, kind: input, shape index: {}]
  %s1 = inlined_call_operand.vmem [shape: f32[2,4,1], index: 1, kind: input, shape index: {}]
  %s2 = inlined_call_operand.vmem [shape: f32[2,4,1], index: 2, kind: input, shape index: {}]
  %s3 = inlined_call_operand.hbm [shape: f32[2,4,16], index: 3, kind: output, shape index: {}]
  %s4 = sld [smem:[#allocation0]]
  $region22: #{tpu_custom_call.1} parent=0
    _
  %s6 = ssub.s32 1, %s4
  %s7 = scalar_select 0, %s6, %s4
  $region1: #{tpu_custom_call.1} parent=0
    #allocation2 [shape = 'u8[4096]{0}', space=vmem, size = 0x1000, scoped, tag = 'output window, operand 0, single buffered']
    #allocation3 [shape = 's32[1]{0}', space=sflag, size = 0x4, scoped, tag = 'scoped memory for tpu_custom_call.1']
    %8 = vsyncpa [#allocation3], 0
    // Predicated region
    $region2: #{tpu_custom_call.1} parent=1 // pred_check
      _
    $region3: #{tpu_custom_call.1} parent=1 // pred_check_branch
      %10 = sbr.rel (0) target = $region5
    $region4: #{tpu_custom_call.1} parent=1 // pred_region
      _
    $region5: #{tpu_custom_call.1} parent=1 // pred_fallthru
      _
    // Predicated region
    $region6: #{tpu_custom_call.1} parent=1 // pred_check
      _
    $region7: #{tpu_custom_call.1} parent=1 // pred_check_branch
      %12 = sbr.rel (0) target = $region9
    $region8: #{tpu_custom_call.1} parent=1 // pred_region
      _
    $region9: #{tpu_custom_call.1} parent=1 // pred_fallthru
      _
    // Predicated region
    $region10: #{tpu_custom_call.1} parent=1 // pred_check
      _
    $region11: #{tpu_custom_call.1} parent=1 // pred_check_branch
      %14 = sbr.rel (0) target = $region13
    $region12: #{tpu_custom_call.1} parent=1 // pred_region
      _
    $region13: #{tpu_custom_call.1} parent=1 // pred_fallthru
      _
    %v15 = vld [vmem:[%s0] sm:$0xf]
    %v16 = vld [vmem:[%s0 + $0x4] sm:$0xf]
    %vm17 = vcmask 125952
    %v18 = vsel %vm17, %v15, 0.0
    %v19 = vsel %vm17, %v16, 0.0
    %v20 = vadd.f32 %v18, %v19
    %21 = vadd.xlane.f32.xlu0 %v20
    %v22 = vpop.xlane.xlu0 %21
    %v23 = vrcp.pop 32.0
    %v24 = vmul.f32 %v22, %v23
    %v25 = vsub.f32 %v15, %v24
    %v26 = vsub.f32 %v16, %v24
    %v27 = vmul.f32 %v25, %v25
    %v28 = vmul.f32 %v26, %v26
    %v29 = vsel %vm17, %v27, 0.0
    %v30 = vsel %vm17, %v28, 0.0
    %v31 = vadd.f32 %v29, %v30
    %32 = vadd.xlane.f32.xlu0 %v31
    %v33 = vpop.xlane.xlu0 %32
    %v34 = vmul.f32 %v33, %v23
    %v35 = vadd.f32 %v34, 1e-05
    %v36 = vrsqrt.pop %v35
    %v37 = vmul.f32 %v25, %v36
    %v38 = vmul.f32 %v26, %v36
    %v39 = vld [vmem:[%s1] sm:$0xf]
    %v40 = vld [vmem:[%s1 + $0x4] sm:$0xf]
    %42 = vset.pattern.permute.xlu0 0
    %43 = vperm.xlu0 %42, %v39
    %v44 = vpop.permute.xlu0 %43
    %47 = vset.pattern.permute.xlu0 0
    %48 = vperm.xlu0 %47, %v40
    %v49 = vpop.permute.xlu0 %48
    %v51 = vmul.f32 %v44, %v37
    %v52 = vmul.f32 %v49, %v38
    %v53 = vld [vmem:[%s2] sm:$0xf]
    %v54 = vld [vmem:[%s2 + $0x4] sm:$0xf]
    %56 = vset.pattern.permute.xlu0 0
    %57 = vperm.xlu0 %56, %v53
    %v58 = vpop.permute.xlu0 %57
    %61 = vset.pattern.permute.xlu0 0
    %62 = vperm.xlu0 %61, %v54
    %v63 = vpop.permute.xlu0 %62
    %v65 = vadd.f32 %v51, %v58
    %v66 = vadd.f32 %v52, %v63
    %67 = vst.msk [vmem:[#allocation2] sm:$0xf] %vm17, %v65
    %68 = vst.msk [vmem:[#allocation2 + $0x4] sm:$0xf] %vm17, %v66
    // Predicated region
    $region14: #{tpu_custom_call.1} parent=1 // pred_check
      _
    $region15: #{tpu_custom_call.1} parent=1 // pred_check_branch
      %70 = sbr.rel (0) target = $region17
    $region16: #{tpu_custom_call.1} parent=1 // pred_region
      %s72 = ssub.s32 128, 128
      %73 = vsyncadd [#allocation3], %s72
      %s74 = sshll.u32 [#allocation2], 4
      %s75 = int_to_ptr.vmem [resolvable:$true] %s74
      %80 = dma.vmem_to_hbm [thread:$0]  %s75, 128, %s3, [#allocation3], 64, 64, 4
    $region17: #{tpu_custom_call.1} parent=1 // pred_fallthru
      _
    // Predicated region
    $region18: #{tpu_custom_call.1} parent=1 // pred_check
      _
    $region19: #{tpu_custom_call.1} parent=1 // pred_check_branch
      %82 = sbr.rel (0) target = $region21
    $region20: #{tpu_custom_call.1} parent=1 // pred_region
      %83 = dma.done [#allocation3], 128
    $region21: #{tpu_custom_call.1} parent=1 // pred_fallthru
      _
    %84 = vsyncpa [#allocation3], 1

</llo_original>
